<compile_context>
chip_gen: v5e
topology: v5e:2x2
jax: 0.10.0
libtpu: 0.0.40
codegen_flags: <defaults>
</compile_context>

<pallas_src>
import functools

import jax
import jax.numpy as jnp
from jax.experimental import pallas as pl
from jax.experimental.pallas import tpu as pltpu

IN_DIM = 100
HID_DIM = 64
OUT_DIM = 2

PAD_IN = 128    # 100 -> 128 (lane-aligned contraction)
PAD_OUT = 128   # 2   -> 128 (lane-dense output slab / full MXU RHS)
NEG_INF = -1e30


def _mlp_kernel(x_ref, w1_ref, b1_ref, w2_ref, b2_ref, w3_ref, b3_ref, o_ref):
    # x_ref: (TILE_B, 128). Weights are (in, out) so the kernel computes x @ W + b.
    x = x_ref[...]

    h1 = jnp.dot(x, w1_ref[...], preferred_element_type=jnp.float32) + b1_ref[...]
    h1 = jnp.maximum(h1, 0.0)                                        # (TILE_B, 64)

    h2 = jnp.dot(h1, w2_ref[...], preferred_element_type=jnp.float32) + b2_ref[...]
    h2 = jnp.maximum(h2, 0.0)                                        # (TILE_B, 64)

    # fc3 padded to 128 output lanes; padded lanes carry bias = -1e30 so they
    # contribute exp(...) ~= 0 to the softmax denominator.
    logits = jnp.dot(h2, w3_ref[...], preferred_element_type=jnp.float32) + b3_ref[...]

    m = jnp.max(logits, axis=-1, keepdims=True)
    e = jnp.exp(logits - m)
    inv = pl.reciprocal(jnp.sum(e, axis=-1, keepdims=True), approx=True)
    o_ref[...] = e * inv                                             # (TILE_B, 128)


@functools.partial(jax.jit, static_argnames=("tile_b",))
def net_forward_batched(x, params, *, tile_b=128):
    """x: (B, 100) float32 -> (B, 2) float32 per-row softmax probabilities.

    tile_b must be a multiple of 128 (use 256+ on v6e/v7x for max MXU
    utilization; 128 keeps the small example cheap and works on v5e too).
    """
    w1, b1, w2, b2, w3, b3 = params
    B = x.shape[0]
    pad_b = ((B + tile_b - 1) // tile_b) * tile_b

    # One-time padding in the wrapper (zero batch rows / zero feature columns /
    # zero w1 rows are numerically inert; padded fc3 lanes get -inf-ish bias).
    xp = jnp.zeros((pad_b, PAD_IN), jnp.float32).at[:B, :IN_DIM].set(x)
    w1p = jnp.zeros((PAD_IN, HID_DIM), jnp.float32).at[:IN_DIM, :].set(w1)
    w3p = jnp.zeros((HID_DIM, PAD_OUT), jnp.float32).at[:, :OUT_DIM].set(w3)
    b3p = jnp.full((1, PAD_OUT), NEG_INF, jnp.float32).at[:, :OUT_DIM].set(b3)

    grid = (pad_b // tile_b,)

    out = pl.pallas_call(
        _mlp_kernel,
        out_shape=jax.ShapeDtypeStruct((pad_b, PAD_OUT), jnp.float32),
        grid=grid,
        in_specs=[
            # activations: tiled over the batch
            pl.BlockSpec((tile_b, PAD_IN), lambda i: (i, 0)),
            # weights/biases: constant index_map -> resident in VMEM for all steps
            pl.BlockSpec((PAD_IN, HID_DIM), lambda i: (0, 0)),
            pl.BlockSpec((1, HID_DIM), lambda i: (0, 0)),
            pl.BlockSpec((HID_DIM, HID_DIM), lambda i: (0, 0)),
            pl.BlockSpec((1, HID_DIM), lambda i: (0, 0)),
            pl.BlockSpec((HID_DIM, PAD_OUT), lambda i: (0, 0)),
            pl.BlockSpec((1, PAD_OUT), lambda i: (0, 0)),
        ],
        out_specs=pl.BlockSpec((tile_b, PAD_OUT), lambda i: (i, 0)),
        compiler_params=pltpu.CompilerParams(
            dimension_semantics=("parallel",),
        ),
    )(xp, w1p, b1, w2, b2, w3p, b3p)

    return out[:B, :OUT_DIM]


def net_forward(x, params):
    """Matches the original module exactly: (100,) float32 -> (2,) softmax."""
    return net_forward_batched(x.reshape(1, IN_DIM), params)[0]


def init_params(key):
    """Deterministic init mimicking PyTorch's default Linear init:
    U(-1/sqrt(fan_in), 1/sqrt(fan_in)). Weights stored as (in, out)."""
    ks = jax.random.split(key, 6)

    def linear(kw, kb, fan_in, fan_out):
        bound = 1.0 / jnp.sqrt(jnp.float32(fan_in))
        w = jax.random.uniform(kw, (fan_in, fan_out), jnp.float32, -bound, bound)
        b = jax.random.uniform(kb, (1, fan_out), jnp.float32, -bound, bound)
        return w, b

    w1, b1 = linear(ks[0], ks[1], IN_DIM, HID_DIM)
    w2, b2 = linear(ks[2], ks[3], HID_DIM, HID_DIM)
    w3, b3 = linear(ks[4], ks[5], HID_DIM, OUT_DIM)
    return (w1, b1, w2, b2, w3, b3)


def _reference(x_batch, params):
    """Pure-JAX reference of the per-vector forward pass."""
    w1, b1, w2, b2, w3, b3 = params
    h1 = jnp.maximum(x_batch @ w1 + b1[0], 0.0)
    h2 = jnp.maximum(h1 @ w2 + b2[0], 0.0)
    logits = h2 @ w3 + b3[0]
    return jax.nn.softmax(logits, axis=-1)


if __name__ == "__main__":
    key = jax.random.PRNGKey(0)
    k_x, k_xb, k_p = jax.random.split(key, 3)

    params = init_params(k_p)

    # (a) the module's own use case: a single length-100 vector
    x_single = jax.random.uniform(k_x, (IN_DIM,), jnp.float32)
    y_single = jax.block_until_ready(net_forward(x_single, params))

    # (b) small batched case exercising the gridded kernel
    B = 8
    x_batch = jax.random.uniform(k_xb, (B, IN_DIM), jnp.float32)
    y_batch = jax.block_until_ready(net_forward_batched(x_batch, params))

    # correctness checks against the pure-JAX reference
    ref_single = _reference(x_single.reshape(1, IN_DIM), params)[0]
    ref_batch = _reference(x_batch, params)

    assert y_single.shape == (OUT_DIM,)
    assert y_batch.shape == (B, OUT_DIM)
    assert jnp.max(jnp.abs(y_single - ref_single)) < 2e-3
    assert jnp.max(jnp.abs(y_batch - ref_batch)) < 2e-3
    # softmax rows sum to 1 (approx reciprocal -> small tolerance)
    assert jnp.max(jnp.abs(jnp.sum(y_batch, axis=-1) - 1.0)) < 5e-3
    assert abs(float(jnp.sum(y_single)) - 1.0) < 5e-3

    print("KERNEL_OK")
</pallas_src>

<mosaic_0001>
module attributes {stable_mosaic.version = 11 : i64} {
  func.func @_mlp_kernel(%arg0: i32, %arg1: memref<128x128xf32, #tpu.memory_space<vmem>>, %arg2: memref<128x64xf32, #tpu.memory_space<vmem>>, %arg3: memref<1x64xf32, #tpu.memory_space<vmem>>, %arg4: memref<64x64xf32, #tpu.memory_space<vmem>>, %arg5: memref<1x64xf32, #tpu.memory_space<vmem>>, %arg6: memref<64x128xf32, #tpu.memory_space<vmem>>, %arg7: memref<1x128xf32, #tpu.memory_space<vmem>>, %arg8: memref<128x128xf32, #tpu.memory_space<vmem>>) attributes {dimension_semantics = [#tpu.dimension_semantics<parallel>], iteration_bounds = array<i64: 1>, scalar_prefetch = 0 : i64, scratch_operands = 0 : i64, tpu.core_type = #tpu.core_type<tc>, window_params = [{transform_indices = @transform_0, window_bounds = array<i64: 128, 128>}, {pipeline_mode = #tpu.pipeline_mode<synchronous>, transform_indices = @transform_1, window_bounds = array<i64: 128, 64>}, {pipeline_mode = #tpu.pipeline_mode<synchronous>, transform_indices = @transform_2, window_bounds = array<i64: 1, 64>}, {pipeline_mode = #tpu.pipeline_mode<synchronous>, transform_indices = @transform_3, window_bounds = array<i64: 64, 64>}, {pipeline_mode = #tpu.pipeline_mode<synchronous>, transform_indices = @transform_4, window_bounds = array<i64: 1, 64>}, {pipeline_mode = #tpu.pipeline_mode<synchronous>, transform_indices = @transform_5, window_bounds = array<i64: 64, 128>}, {pipeline_mode = #tpu.pipeline_mode<synchronous>, transform_indices = @transform_6, window_bounds = array<i64: 1, 128>}, {transform_indices = @transform_7, window_bounds = array<i64: 128, 128>}]} {
    %c0 = arith.constant 0 : index
    %c0_0 = arith.constant 0 : index
    %0 = vector.load %arg1[%c0, %c0_0] : memref<128x128xf32, #tpu.memory_space<vmem>>, vector<128x128xf32>
    %c0_1 = arith.constant 0 : index
    %c0_2 = arith.constant 0 : index
    %1 = vector.load %arg2[%c0_1, %c0_2] : memref<128x64xf32, #tpu.memory_space<vmem>>, vector<128x64xf32>
    %cst = arith.constant dense<0.000000e+00> : vector<128x64xf32>
    %2 = tpu.matmul %0, %1, %cst {dimension_numbers = #tpu.dot_dimension_numbers<[1], [0], [0], [1], [0, 0, 1, 1], [], []>} : vector<128x128xf32>, vector<128x64xf32>, vector<128x64xf32> -> vector<128x64xf32>
    %c0_3 = arith.constant 0 : index
    %c0_4 = arith.constant 0 : index
    %3 = vector.load %arg3[%c0_3, %c0_4] : memref<1x64xf32, #tpu.memory_space<vmem>>, vector<1x64xf32>
    %4 = vector.broadcast %3 : vector<1x64xf32> to vector<128x64xf32>
    %5 = arith.addf %2, %4 : vector<128x64xf32>
    %cst_5 = arith.constant 0.000000e+00 : f32
    %6 = vector.broadcast %cst_5 : f32 to vector<128x64xf32>
    %7 = arith.maximumf %5, %6 : vector<128x64xf32>
    %c0_6 = arith.constant 0 : index
    %c0_7 = arith.constant 0 : index
    %8 = vector.load %arg4[%c0_6, %c0_7] : memref<64x64xf32, #tpu.memory_space<vmem>>, vector<64x64xf32>
    %cst_8 = arith.constant dense<0.000000e+00> : vector<128x64xf32>
    %9 = tpu.matmul %7, %8, %cst_8 {dimension_numbers = #tpu.dot_dimension_numbers<[1], [0], [0], [1], [0, 0, 1, 1], [], []>} : vector<128x64xf32>, vector<64x64xf32>, vector<128x64xf32> -> vector<128x64xf32>
    %c0_9 = arith.constant 0 : index
    %c0_10 = arith.constant 0 : index
    %10 = vector.load %arg5[%c0_9, %c0_10] : memref<1x64xf32, #tpu.memory_space<vmem>>, vector<1x64xf32>
    %11 = vector.broadcast %10 : vector<1x64xf32> to vector<128x64xf32>
    %12 = arith.addf %9, %11 : vector<128x64xf32>
    %cst_11 = arith.constant 0.000000e+00 : f32
    %13 = vector.broadcast %cst_11 : f32 to vector<128x64xf32>
    %14 = arith.maximumf %12, %13 : vector<128x64xf32>
    %c0_12 = arith.constant 0 : index
    %c0_13 = arith.constant 0 : index
    %15 = vector.load %arg6[%c0_12, %c0_13] : memref<64x128xf32, #tpu.memory_space<vmem>>, vector<64x128xf32>
    %cst_14 = arith.constant dense<0.000000e+00> : vector<128x128xf32>
    %16 = tpu.matmul %14, %15, %cst_14 {dimension_numbers = #tpu.dot_dimension_numbers<[1], [0], [0], [1], [0, 0, 1, 1], [], []>} : vector<128x64xf32>, vector<64x128xf32>, vector<128x128xf32> -> vector<128x128xf32>
    %c0_15 = arith.constant 0 : index
    %c0_16 = arith.constant 0 : index
    %17 = vector.load %arg7[%c0_15, %c0_16] : memref<1x128xf32, #tpu.memory_space<vmem>>, vector<1x128xf32>
    %18 = vector.broadcast %17 : vector<1x128xf32> to vector<128x128xf32>
    %19 = arith.addf %16, %18 : vector<128x128xf32>
    %cst_17 = arith.constant dense<0xFF800000> : vector<128xf32>
    %20 = vector.multi_reduction <maximumf>, %19, %cst_17 [1] : vector<128x128xf32> to vector<128xf32>
    %21 = vector.shape_cast %20 : vector<128xf32> to vector<128x1xf32>
    %22 = vector.broadcast %21 : vector<128x1xf32> to vector<128x128xf32>
    %23 = arith.subf %19, %22 : vector<128x128xf32>
    %24 = math.exp %23 : vector<128x128xf32>
    %cst_18 = arith.constant dense<0.000000e+00> : vector<128xf32>
    %25 = vector.multi_reduction <add>, %24, %cst_18 [1] : vector<128x128xf32> to vector<128xf32>
    %26 = vector.shape_cast %25 : vector<128xf32> to vector<128x1xf32>
    %27 = tpu.reciprocal %26 {approx = true} : vector<128x1xf32> -> vector<128x1xf32>
    %28 = vector.broadcast %27 : vector<128x1xf32> to vector<128x128xf32>
    %29 = arith.mulf %24, %28 : vector<128x128xf32>
    %c0_19 = arith.constant 0 : index
    %c0_20 = arith.constant 0 : index
    %30 = vector.load %arg8[%c0_19, %c0_20] : memref<128x128xf32, #tpu.memory_space<vmem>>, vector<128x128xf32>
    tpu.vector_store %arg8[%c0_19, %c0_20], %29 {strides = array<i32>} : memref<128x128xf32, #tpu.memory_space<vmem>>, vector<128x128xf32>,
    return
  }
  func.func @transform_0(%arg0: i32) -> (i32, i32) {
    %c0_i32 = arith.constant 0 : i32
    %c0_i32_0 = arith.constant 0 : i32
    return %arg0, %c0_i32 : i32, i32
  }
  func.func @transform_1(%arg0: i32) -> (i32, i32) {
    %c0_i32 = arith.constant 0 : i32
    %c0_i32_0 = arith.constant 0 : i32
    %c0_i32_1 = arith.constant 0 : i32
    return %c0_i32, %c0_i32_0 : i32, i32
  }
  func.func @transform_2(%arg0: i32) -> (i32, i32) {
    %c0_i32 = arith.constant 0 : i32
    %c0_i32_0 = arith.constant 0 : i32
    %c0_i32_1 = arith.constant 0 : i32
    return %c0_i32, %c0_i32_0 : i32, i32
  }
  func.func @transform_3(%arg0: i32) -> (i32, i32) {
    %c0_i32 = arith.constant 0 : i32
    %c0_i32_0 = arith.constant 0 : i32
    %c0_i32_1 = arith.constant 0 : i32
    return %c0_i32, %c0_i32_0 : i32, i32
  }
  func.func @transform_4(%arg0: i32) -> (i32, i32) {
    %c0_i32 = arith.constant 0 : i32
    %c0_i32_0 = arith.constant 0 : i32
    %c0_i32_1 = arith.constant 0 : i32
    return %c0_i32, %c0_i32_0 : i32, i32
  }
  func.func @transform_5(%arg0: i32) -> (i32, i32) {
    %c0_i32 = arith.constant 0 : i32
    %c0_i32_0 = arith.constant 0 : i32
    %c0_i32_1 = arith.constant 0 : i32
    return %c0_i32, %c0_i32_0 : i32, i32
  }
  func.func @transform_6(%arg0: i32) -> (i32, i32) {
    %c0_i32 = arith.constant 0 : i32
    %c0_i32_0 = arith.constant 0 : i32
    %c0_i32_1 = arith.constant 0 : i32
    return %c0_i32, %c0_i32_0 : i32, i32
  }
  func.func @transform_7(%arg0: i32) -> (i32, i32) {
    %c0_i32 = arith.constant 0 : i32
    %c0_i32_0 = arith.constant 0 : i32
    return %arg0, %c0_i32 : i32, i32
  }
}

</mosaic_0001>

<llo_original>
// kernel: net_forward_batched.1
$region0: #{net_forward_batched.1}
  #allocation0 [shape = 'u32[]', space=smem, size = 0x4, offset = 0x4, fixed_abs, tag = 'smem constant byte address 0x4 - core index']
  #allocation1 [shape = 'u32[72,128]{1,0:T(1,128)}', space=vmem, size = 0x9000, scoped, tag = 'internal scratch']
  %s0 = inlined_call_operand.vmem [shape: f32[128,128], index: 0, kind: input, shape index: {}]
  %s1 = inlined_call_operand.vmem [shape: f32[128,64], index: 1, kind: input, shape index: {}]
  %s2 = inlined_call_operand.vmem [shape: f32[1,64], index: 2, kind: input, shape index: {}]
  %s3 = inlined_call_operand.vmem [shape: f32[64,64], index: 3, kind: input, shape index: {}]
  %s4 = inlined_call_operand.vmem [shape: f32[1,64], index: 4, kind: input, shape index: {}]
  %s5 = inlined_call_operand.vmem [shape: f32[64,128], index: 5, kind: input, shape index: {}]
  %s6 = inlined_call_operand.vmem [shape: f32[1,128], index: 6, kind: input, shape index: {}]
  %s7 = inlined_call_operand.vmem [shape: f32[128,128], index: 7, kind: output, shape index: {}]
  %s8 = sld [smem:[#allocation0]]
  $region38: #{net_forward_batched.1} parent=0
    _
  %s10 = ssub.s32 1, %s8
  %s11 = scalar_select 0, %s10, %s8
  // Predicated region
  $region2: #{net_forward_batched.1} parent=0 // pred_check
    _
  $region3: #{net_forward_batched.1} parent=0 // pred_check_branch
    %13 = sbr.rel (0) target = $region5
  $region4: #{net_forward_batched.1} parent=0 // pred_region
    _
  $region5: #{net_forward_batched.1} parent=0 // pred_fallthru
    _
  // Predicated region
  $region6: #{net_forward_batched.1} parent=0 // pred_check
    _
  $region7: #{net_forward_batched.1} parent=0 // pred_check_branch
    %15 = sbr.rel (0) target = $region9
  $region8: #{net_forward_batched.1} parent=0 // pred_region
    _
  $region9: #{net_forward_batched.1} parent=0 // pred_fallthru
    _
  // Predicated region
  $region10: #{net_forward_batched.1} parent=0 // pred_check
    _
  $region11: #{net_forward_batched.1} parent=0 // pred_check_branch
    %17 = sbr.rel (0) target = $region13
  $region12: #{net_forward_batched.1} parent=0 // pred_region
    _
  $region13: #{net_forward_batched.1} parent=0 // pred_fallthru
    _
  // Predicated region
  $region14: #{net_forward_batched.1} parent=0 // pred_check
    _
  $region15: #{net_forward_batched.1} parent=0 // pred_check_branch
    %19 = sbr.rel (0) target = $region17
  $region16: #{net_forward_batched.1} parent=0 // pred_region
    _
  $region17: #{net_forward_batched.1} parent=0 // pred_fallthru
    _
  // Predicated region
  $region18: #{net_forward_batched.1} parent=0 // pred_check
    _
  $region19: #{net_forward_batched.1} parent=0 // pred_check_branch
    %21 = sbr.rel (0) target = $region21
  $region20: #{net_forward_batched.1} parent=0 // pred_region
    _
  $region21: #{net_forward_batched.1} parent=0 // pred_fallthru
    _
  // Predicated region
  $region22: #{net_forward_batched.1} parent=0 // pred_check
    _
  $region23: #{net_forward_batched.1} parent=0 // pred_check_branch
    %23 = sbr.rel (0) target = $region25
  $region24: #{net_forward_batched.1} parent=0 // pred_region
    _
  $region25: #{net_forward_batched.1} parent=0 // pred_fallthru
    _
  // Predicated region
  $region26: #{net_forward_batched.1} parent=0 // pred_check
    _
  $region27: #{net_forward_batched.1} parent=0 // pred_check_branch
    %25 = sbr.rel (0) target = $region29
  $region28: #{net_forward_batched.1} parent=0 // pred_region
    _
  $region29: #{net_forward_batched.1} parent=0 // pred_fallthru
    _
  %v26 = vld [vmem:[%s0] sm:$0xff]
  %v27 = vld [vmem:[%s0 + $0x8] sm:$0xff]
  %v28 = vld [vmem:[%s0 + $0x10] sm:$0xff]
  %v29 = vld [vmem:[%s0 + $0x18] sm:$0xff]
  %v30 = vld [vmem:[%s0 + $0x20] sm:$0xff]
  %v31 = vld [vmem:[%s0 + $0x28] sm:$0xff]
  %v32 = vld [vmem:[%s0 + $0x30] sm:$0xff]
  %v33 = vld [vmem:[%s0 + $0x38] sm:$0xff]
  %v34 = vld [vmem:[%s0 + $0x40] sm:$0xff]
  %v35 = vld [vmem:[%s0 + $0x48] sm:$0xff]
  %v36 = vld [vmem:[%s0 + $0x50] sm:$0xff]
  %v37 = vld [vmem:[%s0 + $0x58] sm:$0xff]
  %v38 = vld [vmem:[%s0 + $0x60] sm:$0xff]
  %v39 = vld [vmem:[%s0 + $0x68] sm:$0xff]
  %v40 = vld [vmem:[%s0 + $0x70] sm:$0xff]
  %v41 = vld [vmem:[%s0 + $0x78] sm:$0xff]
  %v42 = vld [vmem:[%s1] sm:$0xff]
  %v43 = vld [vmem:[%s1 + $0x8] sm:$0xff]
  %v44 = vld [vmem:[%s1 + $0x10] sm:$0xff]
  %v45 = vld [vmem:[%s1 + $0x18] sm:$0xff]
  %v46 = vld [vmem:[%s1 + $0x20] sm:$0xff]
  %v47 = vld [vmem:[%s1 + $0x28] sm:$0xff]
  %v48 = vld [vmem:[%s1 + $0x30] sm:$0xff]
  %v49 = vld [vmem:[%s1 + $0x38] sm:$0xff]
  %v50 = vld [vmem:[%s1 + $0x40] sm:$0xff]
  %v51 = vld [vmem:[%s1 + $0x48] sm:$0xff]
  %v52 = vld [vmem:[%s1 + $0x50] sm:$0xff]
  %v53 = vld [vmem:[%s1 + $0x58] sm:$0xff]
  %v54 = vld [vmem:[%s1 + $0x60] sm:$0xff]
  %v55 = vld [vmem:[%s1 + $0x68] sm:$0xff]
  %v56 = vld [vmem:[%s1 + $0x70] sm:$0xff]
  %v57 = vld [vmem:[%s1 + $0x78] sm:$0xff]
  %v58 = vld [vmem:[%s2] sm:$0x1]
  %v60 = vperm.slane %v58, 0
  %62 = vmatpush.msra.mxu0 %v57
  %63 = vmatpush.msra.mxu0 %v56
  %64 = vmatpush.msra.mxu0 %v55
  %65 = vmatpush.msra.mxu0 %v54
  %66 = vmatpush.msra.mxu0 %v53
  %67 = vmatpush.msra.mxu0 %v52
  %68 = vmatpush.msra.mxu0 %v51
  %69 = vmatpush.msra.mxu0 %v50
  %70 = vmatpush.msra.mxu0 %v49
  %71 = vmatpush.msra.mxu0 %v48
  %72 = vmatpush.msra.mxu0 %v47
  %73 = vmatpush.msra.mxu0 %v46
  %74 = vmatpush.msra.mxu0 %v45
  %75 = vmatpush.msra.mxu0 %v44
  %76 = vmatpush.msra.mxu0 %v43
  %77 = vmatpush.msra.mxu0 %v42
  %78 = vmatmul.f32.gmra.mxu0 %v26
  %v79 = vpop.f32.mrf.mxu0
  %v80 = vadd.f32 %v60, %v79
  %81 = vmatmul.f32.gmra.mxu0 %v27
  %v82 = vpop.f32.mrf.mxu0
  %v83 = vadd.f32 %v60, %v82
  %84 = vmatmul.f32.gmra.mxu0 %v28
  %v85 = vpop.f32.mrf.mxu0
  %v86 = vadd.f32 %v60, %v85
  %87 = vmatmul.f32.gmra.mxu0 %v29
  %v88 = vpop.f32.mrf.mxu0
  %v89 = vadd.f32 %v60, %v88
  %90 = vmatmul.f32.gmra.mxu0 %v30
  %v91 = vpop.f32.mrf.mxu0
  %v92 = vadd.f32 %v60, %v91
  %93 = vmatmul.f32.gmra.mxu0 %v31
  %v94 = vpop.f32.mrf.mxu0
  %v95 = vadd.f32 %v60, %v94
  %96 = vmatmul.f32.gmra.mxu0 %v32
  %v97 = vpop.f32.mrf.mxu0
  %v98 = vadd.f32 %v60, %v97
  %99 = vmatmul.f32.gmra.mxu0 %v33
  %v100 = vpop.f32.mrf.mxu0
  %v101 = vadd.f32 %v60, %v100
  %102 = vmatmul.f32.gmra.mxu0 %v34
  %v103 = vpop.f32.mrf.mxu0
  %v104 = vadd.f32 %v60, %v103
  %105 = vmatmul.f32.gmra.mxu0 %v35
  %v106 = vpop.f32.mrf.mxu0
  %v107 = vadd.f32 %v60, %v106
  %108 = vmatmul.f32.gmra.mxu0 %v36
  %v109 = vpop.f32.mrf.mxu0
  %v110 = vadd.f32 %v60, %v109
  %111 = vmatmul.f32.gmra.mxu0 %v37
  %v112 = vpop.f32.mrf.mxu0
  %v113 = vadd.f32 %v60, %v112
  %114 = vmatmul.f32.gmra.mxu0 %v38
  %v115 = vpop.f32.mrf.mxu0
  %v116 = vadd.f32 %v60, %v115
  %117 = vmatmul.f32.gmra.mxu0 %v39
  %v118 = vpop.f32.mrf.mxu0
  %v119 = vadd.f32 %v60, %v118
  %120 = vmatmul.f32.gmra.mxu0 %v40
  %v121 = vpop.f32.mrf.mxu0
  %v122 = vadd.f32 %v60, %v121
  %123 = vmatmul.f32.gmra.mxu0 %v41
  %v124 = vpop.f32.mrf.mxu0
  %v125 = vadd.f32 %v60, %v124
  %126 = vdwg.mxu0
  %v127 = vmax.f32 %v80, 0.0
  %v128 = vmax.f32 %v83, 0.0
  %v129 = vmax.f32 %v86, 0.0
  %v130 = vmax.f32 %v89, 0.0
  %v131 = vmax.f32 %v92, 0.0
  %v132 = vmax.f32 %v95, 0.0
  %v133 = vmax.f32 %v98, 0.0
  %v134 = vmax.f32 %v101, 0.0
  %v135 = vmax.f32 %v104, 0.0
  %v136 = vmax.f32 %v107, 0.0
  %v137 = vmax.f32 %v110, 0.0
  %v138 = vmax.f32 %v113, 0.0
  %v139 = vmax.f32 %v116, 0.0
  %v140 = vmax.f32 %v119, 0.0
  %v141 = vmax.f32 %v122, 0.0
  %v142 = vmax.f32 %v125, 0.0
  %v143 = vld [vmem:[%s3] sm:$0xff]
  %v144 = vld [vmem:[%s3 + $0x8] sm:$0xff]
  %v145 = vld [vmem:[%s3 + $0x10] sm:$0xff]
  %v146 = vld [vmem:[%s3 + $0x18] sm:$0xff]
  %v147 = vld [vmem:[%s3 + $0x20] sm:$0xff]
  %v148 = vld [vmem:[%s3 + $0x28] sm:$0xff]
  %v149 = vld [vmem:[%s3 + $0x30] sm:$0xff]
  %v150 = vld [vmem:[%s3 + $0x38] sm:$0xff]
  %v151 = vld [vmem:[%s4] sm:$0x1]
  %v153 = vperm.slane %v151, 0
  %vm155 = vcmask 523264
  %v157 = vsel %vm155, %v127, 0
  %v160 = vsel %vm155, %v128, 0
  %v163 = vsel %vm155, %v129, 0
  %v166 = vsel %vm155, %v130, 0
  %v169 = vsel %vm155, %v131, 0
  %v172 = vsel %vm155, %v132, 0
  %v175 = vsel %vm155, %v133, 0
  %v178 = vsel %vm155, %v134, 0
  %v181 = vsel %vm155, %v135, 0
  %v184 = vsel %vm155, %v136, 0
  %v187 = vsel %vm155, %v137, 0
  %v190 = vsel %vm155, %v138, 0
  %v193 = vsel %vm155, %v139, 0
  %v196 = vsel %vm155, %v140, 0
  %v199 = vsel %vm155, %v141, 0
  %v202 = vsel %vm155, %v142, 0
  %204 = vmatpush.msra.mxu0 0.0
  %205 = vmatpush.msra.mxu0 0.0
  %206 = vmatpush.msra.mxu0 0.0
  %207 = vmatpush.msra.mxu0 0.0
  %208 = vmatpush.msra.mxu0 0.0
  %209 = vmatpush.msra.mxu0 0.0
  %210 = vmatpush.msra.mxu0 0.0
  %211 = vmatpush.msra.mxu0 0.0
  %212 = vmatpush.msra.mxu0 %v150
  %213 = vmatpush.msra.mxu0 %v149
  %214 = vmatpush.msra.mxu0 %v148
  %215 = vmatpush.msra.mxu0 %v147
  %216 = vmatpush.msra.mxu0 %v146
  %217 = vmatpush.msra.mxu0 %v145
  %218 = vmatpush.msra.mxu0 %v144
  %219 = vmatpush.msra.mxu0 %v143
  %220 = vmatmul.f32.gmra.mxu0 %v157
  %v221 = vpop.f32.mrf.mxu0
  %v222 = vadd.f32 %v153, %v221
  %223 = vmatmul.f32.gmra.mxu0 %v160
  %v224 = vpop.f32.mrf.mxu0
  %v225 = vadd.f32 %v153, %v224
  %226 = vmatmul.f32.gmra.mxu0 %v163
  %v227 = vpop.f32.mrf.mxu0
  %v228 = vadd.f32 %v153, %v227
  %229 = vmatmul.f32.gmra.mxu0 %v166
  %v230 = vpop.f32.mrf.mxu0
  %v231 = vadd.f32 %v153, %v230
  %232 = vmatmul.f32.gmra.mxu0 %v169
  %v233 = vpop.f32.mrf.mxu0
  %v234 = vadd.f32 %v153, %v233
  %235 = vmatmul.f32.gmra.mxu0 %v172
  %v236 = vpop.f32.mrf.mxu0
  %v237 = vadd.f32 %v153, %v236
  %238 = vmatmul.f32.gmra.mxu0 %v175
  %v239 = vpop.f32.mrf.mxu0
  %v240 = vadd.f32 %v153, %v239
  %241 = vmatmul.f32.gmra.mxu0 %v178
  %v242 = vpop.f32.mrf.mxu0
  %v243 = vadd.f32 %v153, %v242
  %244 = vmatmul.f32.gmra.mxu0 %v181
  %v245 = vpop.f32.mrf.mxu0
  %v246 = vadd.f32 %v153, %v245
  %247 = vmatmul.f32.gmra.mxu0 %v184
  %v248 = vpop.f32.mrf.mxu0
  %v249 = vadd.f32 %v153, %v248
  %250 = vmatmul.f32.gmra.mxu0 %v187
  %v251 = vpop.f32.mrf.mxu0
  %v252 = vadd.f32 %v153, %v251
  %253 = vmatmul.f32.gmra.mxu0 %v190
  %v254 = vpop.f32.mrf.mxu0
  %v255 = vadd.f32 %v153, %v254
  %256 = vmatmul.f32.gmra.mxu0 %v193
  %v257 = vpop.f32.mrf.mxu0
  %v258 = vadd.f32 %v153, %v257
  %259 = vmatmul.f32.gmra.mxu0 %v196
  %v260 = vpop.f32.mrf.mxu0
  %v261 = vadd.f32 %v153, %v260
  %262 = vmatmul.f32.gmra.mxu0 %v199
  %v263 = vpop.f32.mrf.mxu0
  %v264 = vadd.f32 %v153, %v263
  %265 = vmatmul.f32.gmra.mxu0 %v202
  %v266 = vpop.f32.mrf.mxu0
  %v267 = vadd.f32 %v153, %v266
  %268 = vdwg.mxu0
  %v269 = vmax.f32 %v222, 0.0
  %v270 = vmax.f32 %v225, 0.0
  %v271 = vmax.f32 %v228, 0.0
  %v272 = vmax.f32 %v231, 0.0
  %v273 = vmax.f32 %v234, 0.0
  %v274 = vmax.f32 %v237, 0.0
  %v275 = vmax.f32 %v240, 0.0
  %v276 = vmax.f32 %v243, 0.0
  %v277 = vmax.f32 %v246, 0.0
  %v278 = vmax.f32 %v249, 0.0
  %v279 = vmax.f32 %v252, 0.0
  %v280 = vmax.f32 %v255, 0.0
  %v281 = vmax.f32 %v258, 0.0
  %v282 = vmax.f32 %v261, 0.0
  %v283 = vmax.f32 %v264, 0.0
  %v284 = vmax.f32 %v267, 0.0
  %v285 = vld [vmem:[%s5] sm:$0xff]
  %v286 = vld [vmem:[%s5 + $0x8] sm:$0xff]
  %v287 = vld [vmem:[%s5 + $0x10] sm:$0xff]
  %v288 = vld [vmem:[%s5 + $0x18] sm:$0xff]
  %v289 = vld [vmem:[%s5 + $0x20] sm:$0xff]
  %v290 = vld [vmem:[%s5 + $0x28] sm:$0xff]
  %v291 = vld [vmem:[%s5 + $0x30] sm:$0xff]
  %v292 = vld [vmem:[%s5 + $0x38] sm:$0xff]
  %v293 = vld [vmem:[%s6] sm:$0x1]
  %v295 = vperm.slane %v293, 0
  %v298 = vsel %vm155, %v269, 0
  %v301 = vsel %vm155, %v270, 0
  %v304 = vsel %vm155, %v271, 0
  %v307 = vsel %vm155, %v272, 0
  %v310 = vsel %vm155, %v273, 0
  %v313 = vsel %vm155, %v274, 0
  %v316 = vsel %vm155, %v275, 0
  %v319 = vsel %vm155, %v276, 0
  %v322 = vsel %vm155, %v277, 0
  %v325 = vsel %vm155, %v278, 0
  %v328 = vsel %vm155, %v279, 0
  %v331 = vsel %vm155, %v280, 0
  %v334 = vsel %vm155, %v281, 0
  %v337 = vsel %vm155, %v282, 0
  %v340 = vsel %vm155, %v283, 0
  %v343 = vsel %vm155, %v284, 0
  %345 = vmatpush.msra.mxu0 0.0
  %346 = vmatpush.msra.mxu0 0.0
  %347 = vmatpush.msra.mxu0 0.0
  %348 = vmatpush.msra.mxu0 0.0
  %349 = vmatpush.msra.mxu0 0.0
  %350 = vmatpush.msra.mxu0 0.0
  %351 = vmatpush.msra.mxu0 0.0
  %352 = vmatpush.msra.mxu0 0.0
  %353 = vmatpush.msra.mxu0 %v292
  %354 = vmatpush.msra.mxu0 %v291
  %355 = vmatpush.msra.mxu0 %v290
  %356 = vmatpush.msra.mxu0 %v289
  %357 = vmatpush.msra.mxu0 %v288
  %358 = vmatpush.msra.mxu0 %v287
  %359 = vmatpush.msra.mxu0 %v286
  %360 = vmatpush.msra.mxu0 %v285
  %361 = vmatmul.f32.gmra.mxu0 %v298
  %v362 = vpop.f32.mrf.mxu0
  %v363 = vadd.f32 %v295, %v362
  %364 = vmatmul.f32.gmra.mxu0 %v301
  %v365 = vpop.f32.mrf.mxu0
  %v366 = vadd.f32 %v295, %v365
  %367 = vmatmul.f32.gmra.mxu0 %v304
  %v368 = vpop.f32.mrf.mxu0
  %v369 = vadd.f32 %v295, %v368
  %370 = vmatmul.f32.gmra.mxu0 %v307
  %v371 = vpop.f32.mrf.mxu0
  %v372 = vadd.f32 %v295, %v371
  %373 = vmatmul.f32.gmra.mxu0 %v310
  %v374 = vpop.f32.mrf.mxu0
  %v375 = vadd.f32 %v295, %v374
  %376 = vmatmul.f32.gmra.mxu0 %v313
  %v377 = vpop.f32.mrf.mxu0
  %v378 = vadd.f32 %v295, %v377
  %379 = vmatmul.f32.gmra.mxu0 %v316
  %v380 = vpop.f32.mrf.mxu0
  %v381 = vadd.f32 %v295, %v380
  %382 = vmatmul.f32.gmra.mxu0 %v319
  %v383 = vpop.f32.mrf.mxu0
  %v384 = vadd.f32 %v295, %v383
  %385 = vmatmul.f32.gmra.mxu0 %v322
  %v386 = vpop.f32.mrf.mxu0
  %v387 = vadd.f32 %v295, %v386
  %388 = vmatmul.f32.gmra.mxu0 %v325
  %v389 = vpop.f32.mrf.mxu0
  %v390 = vadd.f32 %v295, %v389
  %391 = vmatmul.f32.gmra.mxu0 %v328
  %v392 = vpop.f32.mrf.mxu0
  %v393 = vadd.f32 %v295, %v392
  %394 = vmatmul.f32.gmra.mxu0 %v331
  %v395 = vpop.f32.mrf.mxu0
  %v396 = vadd.f32 %v295, %v395
  %397 = vmatmul.f32.gmra.mxu0 %v334
  %v398 = vpop.f32.mrf.mxu0
  %v399 = vadd.f32 %v295, %v398
  %400 = vmatmul.f32.gmra.mxu0 %v337
  %v401 = vpop.f32.mrf.mxu0
  %v402 = vadd.f32 %v295, %v401
  %403 = vmatmul.f32.gmra.mxu0 %v340
  %v404 = vpop.f32.mrf.mxu0
  %v405 = vadd.f32 %v295, %v404
  %406 = vmatmul.f32.gmra.mxu0 %v343
  %v407 = vpop.f32.mrf.mxu0
  %v408 = vadd.f32 %v295, %v407
  %409 = vdwg.mxu0
  %410 = vmax.xlane.f32.xlu0 %v363
  %v411 = vpop.xlane.xlu0 %410
  %412 = vmax.xlane.f32.xlu0 %v366
  %v413 = vpop.xlane.xlu0 %412
  %414 = vmax.xlane.f32.xlu0 %v369
  %v415 = vpop.xlane.xlu0 %414
  %416 = vmax.xlane.f32.xlu0 %v372
  %v417 = vpop.xlane.xlu0 %416
  %418 = vmax.xlane.f32.xlu0 %v375
  %v419 = vpop.xlane.xlu0 %418
  %420 = vmax.xlane.f32.xlu0 %v378
  %v421 = vpop.xlane.xlu0 %420
  %422 = vmax.xlane.f32.xlu0 %v381
  %v423 = vpop.xlane.xlu0 %422
  %424 = vmax.xlane.f32.xlu0 %v384
  %v425 = vpop.xlane.xlu0 %424
  %426 = vmax.xlane.f32.xlu0 %v387
  %v427 = vpop.xlane.xlu0 %426
  %428 = vmax.xlane.f32.xlu0 %v390
  %v429 = vpop.xlane.xlu0 %428
  %430 = vmax.xlane.f32.xlu0 %v393
  %v431 = vpop.xlane.xlu0 %430
  %432 = vmax.xlane.f32.xlu0 %v396
  %v433 = vpop.xlane.xlu0 %432
  %434 = vmax.xlane.f32.xlu0 %v399
  %v435 = vpop.xlane.xlu0 %434
  %436 = vmax.xlane.f32.xlu0 %v402
  %v437 = vpop.xlane.xlu0 %436
  %438 = vmax.xlane.f32.xlu0 %v405
  %v439 = vpop.xlane.xlu0 %438
  %440 = vmax.xlane.f32.xlu0 %v408
  %v441 = vpop.xlane.xlu0 %440
  %v442 = vsub.f32 %v363, %v411
  %v443 = vsub.f32 %v366, %v413
  %v444 = vsub.f32 %v369, %v415
  %v445 = vsub.f32 %v372, %v417
  %v446 = vsub.f32 %v375, %v419
  %v447 = vsub.f32 %v378, %v421
  %v448 = vsub.f32 %v381, %v423
  %v449 = vsub.f32 %v384, %v425
  %v450 = vsub.f32 %v387, %v427
  %v451 = vsub.f32 %v390, %v429
  %v452 = vsub.f32 %v393, %v431
  %v453 = vsub.f32 %v396, %v433
  %v454 = vsub.f32 %v399, %v435
  %v455 = vsub.f32 %v402, %v437
  %v456 = vsub.f32 %v405, %v439
  %v457 = vsub.f32 %v408, %v441
  %v458 = vmul.f32 %v442, 1.442695
  %v459 = vpow.pop %v458
  %v460 = vmul.f32 %v443, 1.442695
  %v461 = vpow.pop %v460
  %v462 = vmul.f32 %v444, 1.442695
  %v463 = vpow.pop %v462
  %v464 = vmul.f32 %v445, 1.442695
  %v465 = vpow.pop %v464
  %v466 = vmul.f32 %v446, 1.442695
  %v467 = vpow.pop %v466
  %v468 = vmul.f32 %v447, 1.442695
  %v469 = vpow.pop %v468
  %v470 = vmul.f32 %v448, 1.442695
  %v471 = vpow.pop %v470
  %v472 = vmul.f32 %v449, 1.442695
  %v473 = vpow.pop %v472
  %v474 = vmul.f32 %v450, 1.442695
  %v475 = vpow.pop %v474
  %v476 = vmul.f32 %v451, 1.442695
  %v477 = vpow.pop %v476
  %v478 = vmul.f32 %v452, 1.442695
  %v479 = vpow.pop %v478
  %v480 = vmul.f32 %v453, 1.442695
  %v481 = vpow.pop %v480
  %v482 = vmul.f32 %v454, 1.442695
  %v483 = vpow.pop %v482
  %v484 = vmul.f32 %v455, 1.442695
  %v485 = vpow.pop %v484
  %v486 = vmul.f32 %v456, 1.442695
  %v487 = vpow.pop %v486
  %v488 = vmul.f32 %v457, 1.442695
  %v489 = vpow.pop %v488
  %490 = vadd.xlane.f32.xlu0 %v459
  %v491 = vpop.xlane.xlu0 %490
  %492 = vadd.xlane.f32.xlu0 %v461
  %v493 = vpop.xlane.xlu0 %492
  %494 = vadd.xlane.f32.xlu0 %v463
  %v495 = vpop.xlane.xlu0 %494
  %496 = vadd.xlane.f32.xlu0 %v465
  %v497 = vpop.xlane.xlu0 %496
  %498 = vadd.xlane.f32.xlu0 %v467
  %v499 = vpop.xlane.xlu0 %498
  %500 = vadd.xlane.f32.xlu0 %v469
  %v501 = vpop.xlane.xlu0 %500
  %502 = vadd.xlane.f32.xlu0 %v471
  %v503 = vpop.xlane.xlu0 %502
  %504 = vadd.xlane.f32.xlu0 %v473
  %v505 = vpop.xlane.xlu0 %504
  %506 = vadd.xlane.f32.xlu0 %v475
  %v507 = vpop.xlane.xlu0 %506
  %508 = vadd.xlane.f32.xlu0 %v477
  %v509 = vpop.xlane.xlu0 %508
  %510 = vadd.xlane.f32.xlu0 %v479
  %v511 = vpop.xlane.xlu0 %510
  %512 = vadd.xlane.f32.xlu0 %v481
  %v513 = vpop.xlane.xlu0 %512
  %514 = vadd.xlane.f32.xlu0 %v483
  %v515 = vpop.xlane.xlu0 %514
  %516 = vadd.xlane.f32.xlu0 %v485
  %v517 = vpop.xlane.xlu0 %516
  %518 = vadd.xlane.f32.xlu0 %v487
  %v519 = vpop.xlane.xlu0 %518
  %520 = vadd.xlane.f32.xlu0 %v489
  %v521 = vpop.xlane.xlu0 %520
  %v522 = vrcp.pop %v491
  %v523 = vrcp.pop %v493
  %v524 = vrcp.pop %v495
  %v525 = vrcp.pop %v497
  %v526 = vrcp.pop %v499
  %v527 = vrcp.pop %v501
  %v528 = vrcp.pop %v503
  %v529 = vrcp.pop %v505
  %v530 = vrcp.pop %v507
  %v531 = vrcp.pop %v509
  %v532 = vrcp.pop %v511
  %v533 = vrcp.pop %v513
  %v534 = vrcp.pop %v515
  %v535 = vrcp.pop %v517
  %v536 = vrcp.pop %v519
  %v537 = vrcp.pop %v521
  %v538 = vmul.f32 %v459, %v522
  %v539 = vmul.f32 %v461, %v523
  %v540 = vmul.f32 %v463, %v524
  %v541 = vmul.f32 %v465, %v525
  %v542 = vmul.f32 %v467, %v526
  %v543 = vmul.f32 %v469, %v527
  %v544 = vmul.f32 %v471, %v528
  %v545 = vmul.f32 %v473, %v529
  %v546 = vmul.f32 %v475, %v530
  %v547 = vmul.f32 %v477, %v531
  %v548 = vmul.f32 %v479, %v532
  %v549 = vmul.f32 %v481, %v533
  %v550 = vmul.f32 %v483, %v534
  %v551 = vmul.f32 %v485, %v535
  %v552 = vmul.f32 %v487, %v536
  %v553 = vmul.f32 %v489, %v537
  %554 = vst [vmem:[%s7] sm:$0xff] %v538
  %555 = vst [vmem:[%s7 + $0x8] sm:$0xff] %v539
  %556 = vst [vmem:[%s7 + $0x10] sm:$0xff] %v540
  %557 = vst [vmem:[%s7 + $0x18] sm:$0xff] %v541
  %558 = vst [vmem:[%s7 + $0x20] sm:$0xff] %v542
  %559 = vst [vmem:[%s7 + $0x28] sm:$0xff] %v543
  %560 = vst [vmem:[%s7 + $0x30] sm:$0xff] %v544
  %561 = vst [vmem:[%s7 + $0x38] sm:$0xff] %v545
  %562 = vst [vmem:[%s7 + $0x40] sm:$0xff] %v546
  %563 = vst [vmem:[%s7 + $0x48] sm:$0xff] %v547
  %564 = vst [vmem:[%s7 + $0x50] sm:$0xff] %v548
  %565 = vst [vmem:[%s7 + $0x58] sm:$0xff] %v549
  %566 = vst [vmem:[%s7 + $0x60] sm:$0xff] %v550
  %567 = vst [vmem:[%s7 + $0x68] sm:$0xff] %v551
  %568 = vst [vmem:[%s7 + $0x70] sm:$0xff] %v552
  %569 = vst [vmem:[%s7 + $0x78] sm:$0xff] %v553
  // Predicated region
  $region30: #{net_forward_batched.1} parent=0 // pred_check
    _
  $region31: #{net_forward_batched.1} parent=0 // pred_check_branch
    %571 = sbr.rel (0) target = $region33
  $region32: #{net_forward_batched.1} parent=0 // pred_region
    _
  $region33: #{net_forward_batched.1} parent=0 // pred_fallthru
    _
  // Predicated region
  $region34: #{net_forward_batched.1} parent=0 // pred_check
    _
  $region35: #{net_forward_batched.1} parent=0 // pred_check_branch
    %573 = sbr.rel (0) target = $region37
  $region36: #{net_forward_batched.1} parent=0 // pred_region
    _
  $region37: #{net_forward_batched.1} parent=0 // pred_fallthru
    _

</llo_original>
